<compile_context>
chip_gen: v7x
topology: tpu7x:2x2x1
jax: 0.10.0
libtpu: 0.0.40
codegen_flags: <defaults>
</compile_context>

<pallas_src>
import functools

import jax
import jax.numpy as jnp
from jax import lax
from jax.experimental import pallas as pl
from jax.experimental.pallas import tpu as pltpu
import numpy as np


def rnn_kernel(ids_ref, tproj_ref, whh_ref, bias_ref, wl_ref, bl_ref, out_ref,
               *, batch):
    """ids_ref  : (S*Bp, 1) int32  — padded token ids, Bp = batch padded to 8
       tproj_ref: (V, H)  f32      — emb_table @ W_ih^T (folded in prepare_params)
       whh_ref  : (H, H)  f32      — W_hh^T
       bias_ref : (1, H)  f32      — b_ih + b_hh (pre-summed)
       wl_ref   : (H, O)  f32      — W_l^T
       bl_ref   : (1, O)  f32
       out_ref  : (S, Bp, O) f32   — softmax over dim=1; padded rows are zero.
    """
    seq, b_pad, out_dim = out_ref.shape
    vocab = tproj_ref.shape[0]
    hidden = whh_ref.shape[0]
    sb = seq * b_pad

    # ---- Fused embedding lookup + input projection (one-hot MXU matmul). ----
    ids = ids_ref[...]                                             # (SB, 1) int32
    onehot = (ids == lax.broadcasted_iota(jnp.int32, (sb, vocab), 1)
              ).astype(jnp.float32)                                # (SB, V)
    pre = (jnp.dot(onehot, tproj_ref[...], preferred_element_type=jnp.float32)
           + bias_ref[...])                                        # (SB, H)

    # ---- Serial ReLU recurrence, fully unrolled; hidden states stay in vregs. ----
    whh = whh_ref[...]
    h = jnp.zeros((b_pad, hidden), jnp.float32)
    hs = []
    for t in range(seq):
        p_t = pre[t * b_pad:(t + 1) * b_pad, :]                    # (Bp, H), 8-aligned
        h = jnp.maximum(
            jnp.dot(h, whh, preferred_element_type=jnp.float32) + p_t, 0.0)
        hs.append(h)
    hs_all = jnp.concatenate(hs, axis=0)                           # (SB, H)

    # ---- Batched linear head: one (SB, H) @ (H, O) matmul. ----
    y = (jnp.dot(hs_all, wl_ref[...], preferred_element_type=jnp.float32)
         + bl_ref[...])                                            # (SB, O)
    y3 = y.reshape(seq, b_pad, out_dim)                            # tile-aligned split

    # ---- Softmax over dim=1 (batch axis), vectorized over all timesteps. ----
    b_idx = lax.broadcasted_iota(jnp.int32, (seq, b_pad, out_dim), 1)
    y3 = jnp.where(b_idx < batch, y3, jnp.float32(-1e30))          # mask padded rows
    m = jnp.max(y3, axis=1, keepdims=True)                         # (S, 1, O)
    e = jnp.exp(y3 - m)                                            # padded rows -> 0
    s = jnp.sum(e, axis=1, keepdims=True)                          # (S, 1, O)
    out_ref[...] = e * pl.reciprocal(s, approx=True)               # single dense store


def prepare_params(params):
    """One-time parameter preparation (kept out of the per-call hot path)."""
    emb_table, w_ih, w_hh, b_ih, b_hh, w_l, b_l = params
    return (
        jnp.dot(emb_table, w_ih.T),          # (V, H): embedding fused with input proj
        w_hh.T,                              # (H, H)
        (b_ih + b_hh).reshape(1, -1),        # (1, H) pre-summed biases
        w_l.T,                               # (H, O)
        b_l.reshape(1, -1),                  # (1, O)
    )


def simple_rnn_forward(x, prepared):
    tproj, whh_t, bias, wl_t, bl = prepared
    seq, batch = x.shape
    out_dim = wl_t.shape[1]
    b_pad = ((batch + 7) // 8) * 8           # pad batch to a full sublane tile

    ids = jnp.zeros((seq, b_pad), jnp.int32).at[:, :batch].set(x)
    ids = ids.reshape(seq * b_pad, 1)

    out = pl.pallas_call(
        functools.partial(rnn_kernel, batch=batch),
        out_shape=jax.ShapeDtypeStruct((seq, b_pad, out_dim), jnp.float32),
        in_specs=[pl.BlockSpec(memory_space=pltpu.MemorySpace.VMEM)] * 6,
        out_specs=pl.BlockSpec(memory_space=pltpu.MemorySpace.VMEM),
    )(ids, tproj, whh_t, bias, wl_t, bl)

    return out[:, :batch, :]


def reference_forward(x, params):
    emb_table, w_ih, w_hh, b_ih, b_hh, w_l, b_l = params
    emb = emb_table[x]                                              # (S, B, E)
    h0 = jnp.zeros((x.shape[1], w_hh.shape[0]), jnp.float32)

    def step(h, x_t):
        h_new = jax.nn.relu(x_t @ w_ih.T + b_ih + h @ w_hh.T + b_hh)
        return h_new, h_new

    _, hs = lax.scan(step, h0, emb)                                 # (S, B, H)
    y = hs @ w_l.T + b_l                                            # (S, B, O)
    return jax.nn.softmax(y, axis=1)


if __name__ == "__main__":
    # Small, deterministic shapes consistent with the module's constructor args.
    vocab_size, embedding_dim, hidden_dim, output_dim = 16, 8, 32, 8
    seq_len, batch = 8, 2

    key = jax.random.PRNGKey(0)
    k_emb, k_wih, k_whh, k_bih, k_bhh, k_wl, k_bl, k_x = jax.random.split(key, 8)

    params = (
        jax.random.normal(k_emb, (vocab_size, embedding_dim), jnp.float32) * 0.5,
        jax.random.normal(k_wih, (hidden_dim, embedding_dim), jnp.float32) * 0.2,
        jax.random.normal(k_whh, (hidden_dim, hidden_dim), jnp.float32) * 0.2,
        jax.random.normal(k_bih, (hidden_dim,), jnp.float32) * 0.1,
        jax.random.normal(k_bhh, (hidden_dim,), jnp.float32) * 0.1,
        jax.random.normal(k_wl, (output_dim, hidden_dim), jnp.float32) * 0.2,
        jax.random.normal(k_bl, (output_dim,), jnp.float32) * 0.1,
    )

    x = jax.random.randint(k_x, (seq_len, batch), 0, vocab_size, dtype=jnp.int32)

    prepared = prepare_params(params)            # one-time, outside the hot path
    out = simple_rnn_forward(x, prepared)
    out = jax.block_until_ready(out)

    ref = jax.block_until_ready(reference_forward(x, params))
    # Tolerance relaxed vs 1e-5 because the softmax normalize uses the EUP
    # approximate reciprocal (~2^-12 relative error).
    np.testing.assert_allclose(np.asarray(out), np.asarray(ref), rtol=2e-3, atol=2e-3)

    print("KERNEL_OK")
</pallas_src>

<mosaic_0001>
module attributes {stable_mosaic.version = 11 : i64} {
  func.func @rnn_kernel(%arg0: memref<64x1xi32, #tpu.memory_space<vmem>>, %arg1: memref<16x32xf32, #tpu.memory_space<vmem>>, %arg2: memref<32x32xf32, #tpu.memory_space<vmem>>, %arg3: memref<1x32xf32, #tpu.memory_space<vmem>>, %arg4: memref<32x8xf32, #tpu.memory_space<vmem>>, %arg5: memref<1x8xf32, #tpu.memory_space<vmem>>, %arg6: memref<8x8x8xf32, #tpu.memory_space<vmem>>) attributes {dimension_semantics = [], scalar_prefetch = 0 : i64, scratch_operands = 0 : i64, tpu.core_type = #tpu.core_type<tc>} {
    %c0 = arith.constant 0 : index
    %c0_0 = arith.constant 0 : index
    %0 = vector.load %arg0[%c0, %c0_0] : memref<64x1xi32, #tpu.memory_space<vmem>>, vector<64x1xi32>
    %1 = tpu.iota {dimensions = array<i32: 1>} : vector<64x16xi32>
    %2 = vector.broadcast %0 : vector<64x1xi32> to vector<64x16xi32>
    %3 = arith.cmpi eq, %2, %1 : vector<64x16xi32>
    %4 = arith.extui %3 : vector<64x16xi1> to vector<64x16xi32>
    %5 = arith.sitofp %4 : vector<64x16xi32> to vector<64x16xf32>
    %c0_1 = arith.constant 0 : index
    %c0_2 = arith.constant 0 : index
    %6 = vector.load %arg1[%c0_1, %c0_2] : memref<16x32xf32, #tpu.memory_space<vmem>>, vector<16x32xf32>
    %cst = arith.constant dense<0.000000e+00> : vector<64x32xf32>
    %7 = tpu.matmul %5, %6, %cst {dimension_numbers = #tpu.dot_dimension_numbers<[1], [0], [0], [1], [0, 0, 1, 1], [], []>} : vector<64x16xf32>, vector<16x32xf32>, vector<64x32xf32> -> vector<64x32xf32>
    %c0_3 = arith.constant 0 : index
    %c0_4 = arith.constant 0 : index
    %8 = vector.load %arg3[%c0_3, %c0_4] : memref<1x32xf32, #tpu.memory_space<vmem>>, vector<1x32xf32>
    %9 = vector.broadcast %8 : vector<1x32xf32> to vector<64x32xf32>
    %10 = arith.addf %7, %9 : vector<64x32xf32>
    %c0_5 = arith.constant 0 : index
    %c0_6 = arith.constant 0 : index
    %11 = vector.load %arg2[%c0_5, %c0_6] : memref<32x32xf32, #tpu.memory_space<vmem>>, vector<32x32xf32>
    %cst_7 = arith.constant 0.000000e+00 : f32
    %12 = vector.broadcast %cst_7 : f32 to vector<8x32xf32>
    %13 = vector.extract_strided_slice %10 {offsets = [0, 0], sizes = [8, 32], strides = [1, 1]} : vector<64x32xf32> to vector<8x32xf32>
    %cst_8 = arith.constant dense<0.000000e+00> : vector<8x32xf32>
    %14 = tpu.matmul %12, %11, %cst_8 {dimension_numbers = #tpu.dot_dimension_numbers<[1], [0], [0], [1], [0, 0, 1, 1], [], []>} : vector<8x32xf32>, vector<32x32xf32>, vector<8x32xf32> -> vector<8x32xf32>
    %15 = arith.addf %14, %13 : vector<8x32xf32>
    %cst_9 = arith.constant 0.000000e+00 : f32
    %16 = vector.broadcast %cst_9 : f32 to vector<8x32xf32>
    %17 = arith.maximumf %15, %16 : vector<8x32xf32>
    %18 = vector.extract_strided_slice %10 {offsets = [8, 0], sizes = [8, 32], strides = [1, 1]} : vector<64x32xf32> to vector<8x32xf32>
    %cst_10 = arith.constant dense<0.000000e+00> : vector<8x32xf32>
    %19 = tpu.matmul %17, %11, %cst_10 {dimension_numbers = #tpu.dot_dimension_numbers<[1], [0], [0], [1], [0, 0, 1, 1], [], []>} : vector<8x32xf32>, vector<32x32xf32>, vector<8x32xf32> -> vector<8x32xf32>
    %20 = arith.addf %19, %18 : vector<8x32xf32>
    %cst_11 = arith.constant 0.000000e+00 : f32
    %21 = vector.broadcast %cst_11 : f32 to vector<8x32xf32>
    %22 = arith.maximumf %20, %21 : vector<8x32xf32>
    %23 = vector.extract_strided_slice %10 {offsets = [16, 0], sizes = [8, 32], strides = [1, 1]} : vector<64x32xf32> to vector<8x32xf32>
    %cst_12 = arith.constant dense<0.000000e+00> : vector<8x32xf32>
    %24 = tpu.matmul %22, %11, %cst_12 {dimension_numbers = #tpu.dot_dimension_numbers<[1], [0], [0], [1], [0, 0, 1, 1], [], []>} : vector<8x32xf32>, vector<32x32xf32>, vector<8x32xf32> -> vector<8x32xf32>
    %25 = arith.addf %24, %23 : vector<8x32xf32>
    %cst_13 = arith.constant 0.000000e+00 : f32
    %26 = vector.broadcast %cst_13 : f32 to vector<8x32xf32>
    %27 = arith.maximumf %25, %26 : vector<8x32xf32>
    %28 = vector.extract_strided_slice %10 {offsets = [24, 0], sizes = [8, 32], strides = [1, 1]} : vector<64x32xf32> to vector<8x32xf32>
    %cst_14 = arith.constant dense<0.000000e+00> : vector<8x32xf32>
    %29 = tpu.matmul %27, %11, %cst_14 {dimension_numbers = #tpu.dot_dimension_numbers<[1], [0], [0], [1], [0, 0, 1, 1], [], []>} : vector<8x32xf32>, vector<32x32xf32>, vector<8x32xf32> -> vector<8x32xf32>
    %30 = arith.addf %29, %28 : vector<8x32xf32>
    %cst_15 = arith.constant 0.000000e+00 : f32
    %31 = vector.broadcast %cst_15 : f32 to vector<8x32xf32>
    %32 = arith.maximumf %30, %31 : vector<8x32xf32>
    %33 = vector.extract_strided_slice %10 {offsets = [32, 0], sizes = [8, 32], strides = [1, 1]} : vector<64x32xf32> to vector<8x32xf32>
    %cst_16 = arith.constant dense<0.000000e+00> : vector<8x32xf32>
    %34 = tpu.matmul %32, %11, %cst_16 {dimension_numbers = #tpu.dot_dimension_numbers<[1], [0], [0], [1], [0, 0, 1, 1], [], []>} : vector<8x32xf32>, vector<32x32xf32>, vector<8x32xf32> -> vector<8x32xf32>
    %35 = arith.addf %34, %33 : vector<8x32xf32>
    %cst_17 = arith.constant 0.000000e+00 : f32
    %36 = vector.broadcast %cst_17 : f32 to vector<8x32xf32>
    %37 = arith.maximumf %35, %36 : vector<8x32xf32>
    %38 = vector.extract_strided_slice %10 {offsets = [40, 0], sizes = [8, 32], strides = [1, 1]} : vector<64x32xf32> to vector<8x32xf32>
    %cst_18 = arith.constant dense<0.000000e+00> : vector<8x32xf32>
    %39 = tpu.matmul %37, %11, %cst_18 {dimension_numbers = #tpu.dot_dimension_numbers<[1], [0], [0], [1], [0, 0, 1, 1], [], []>} : vector<8x32xf32>, vector<32x32xf32>, vector<8x32xf32> -> vector<8x32xf32>
    %40 = arith.addf %39, %38 : vector<8x32xf32>
    %cst_19 = arith.constant 0.000000e+00 : f32
    %41 = vector.broadcast %cst_19 : f32 to vector<8x32xf32>
    %42 = arith.maximumf %40, %41 : vector<8x32xf32>
    %43 = vector.extract_strided_slice %10 {offsets = [48, 0], sizes = [8, 32], strides = [1, 1]} : vector<64x32xf32> to vector<8x32xf32>
    %cst_20 = arith.constant dense<0.000000e+00> : vector<8x32xf32>
    %44 = tpu.matmul %42, %11, %cst_20 {dimension_numbers = #tpu.dot_dimension_numbers<[1], [0], [0], [1], [0, 0, 1, 1], [], []>} : vector<8x32xf32>, vector<32x32xf32>, vector<8x32xf32> -> vector<8x32xf32>
    %45 = arith.addf %44, %43 : vector<8x32xf32>
    %cst_21 = arith.constant 0.000000e+00 : f32
    %46 = vector.broadcast %cst_21 : f32 to vector<8x32xf32>
    %47 = arith.maximumf %45, %46 : vector<8x32xf32>
    %48 = vector.extract_strided_slice %10 {offsets = [56, 0], sizes = [8, 32], strides = [1, 1]} : vector<64x32xf32> to vector<8x32xf32>
    %cst_22 = arith.constant dense<0.000000e+00> : vector<8x32xf32>
    %49 = tpu.matmul %47, %11, %cst_22 {dimension_numbers = #tpu.dot_dimension_numbers<[1], [0], [0], [1], [0, 0, 1, 1], [], []>} : vector<8x32xf32>, vector<32x32xf32>, vector<8x32xf32> -> vector<8x32xf32>
    %50 = arith.addf %49, %48 : vector<8x32xf32>
    %cst_23 = arith.constant 0.000000e+00 : f32
    %51 = vector.broadcast %cst_23 : f32 to vector<8x32xf32>
    %52 = arith.maximumf %50, %51 : vector<8x32xf32>
    %53 = tpu.concatenate %17, %22, %27, %32, %37, %42, %47, %52 in 0 : vector<8x32xf32>, vector<8x32xf32>, vector<8x32xf32>, vector<8x32xf32>, vector<8x32xf32>, vector<8x32xf32>, vector<8x32xf32>, vector<8x32xf32> -> vector<64x32xf32>
    %c0_24 = arith.constant 0 : index
    %c0_25 = arith.constant 0 : index
    %54 = vector.load %arg4[%c0_24, %c0_25] : memref<32x8xf32, #tpu.memory_space<vmem>>, vector<32x8xf32>
    %cst_26 = arith.constant dense<0.000000e+00> : vector<64x8xf32>
    %55 = tpu.matmul %53, %54, %cst_26 {dimension_numbers = #tpu.dot_dimension_numbers<[1], [0], [0], [1], [0, 0, 1, 1], [], []>} : vector<64x32xf32>, vector<32x8xf32>, vector<64x8xf32> -> vector<64x8xf32>
    %c0_27 = arith.constant 0 : index
    %c0_28 = arith.constant 0 : index
    %56 = vector.load %arg5[%c0_27, %c0_28] : memref<1x8xf32, #tpu.memory_space<vmem>>, vector<1x8xf32>
    %57 = vector.broadcast %56 : vector<1x8xf32> to vector<64x8xf32>
    %58 = arith.addf %55, %57 : vector<64x8xf32>
    %59 = vector.shape_cast %58 : vector<64x8xf32> to vector<8x8x8xf32>
    %60 = tpu.iota {dimensions = array<i32: 1>} : vector<8x8x8xi32>
    %c2_i32 = arith.constant 2 : i32
    %61 = vector.broadcast %c2_i32 : i32 to vector<8x8x8xi32>
    %62 = arith.cmpi slt, %60, %61 : vector<8x8x8xi32>
    %cst_29 = arith.constant -1.000000e+30 : f32
    %63 = vector.broadcast %cst_29 : f32 to vector<8x8x8xf32>
    %64 = arith.select %62, %59, %63 : vector<8x8x8xi1>, vector<8x8x8xf32>
    %cst_30 = arith.constant dense<0xFF800000> : vector<8x8xf32>
    %65 = vector.multi_reduction <maximumf>, %64, %cst_30 [1] : vector<8x8x8xf32> to vector<8x8xf32>
    %66 = vector.shape_cast %65 : vector<8x8xf32> to vector<8x1x8xf32>
    %67 = vector.broadcast %66 : vector<8x1x8xf32> to vector<8x8x8xf32>
    %68 = arith.subf %64, %67 : vector<8x8x8xf32>
    %69 = math.exp %68 : vector<8x8x8xf32>
    %cst_31 = arith.constant dense<0.000000e+00> : vector<8x8xf32>
    %70 = vector.multi_reduction <add>, %69, %cst_31 [1] : vector<8x8x8xf32> to vector<8x8xf32>
    %71 = vector.shape_cast %70 : vector<8x8xf32> to vector<8x1x8xf32>
    %72 = tpu.reciprocal %71 {approx = true} : vector<8x1x8xf32> -> vector<8x1x8xf32>
    %73 = vector.broadcast %72 : vector<8x1x8xf32> to vector<8x8x8xf32>
    %74 = arith.mulf %69, %73 : vector<8x8x8xf32>
    %c0_32 = arith.constant 0 : index
    %c0_33 = arith.constant 0 : index
    %c0_34 = arith.constant 0 : index
    %75 = vector.load %arg6[%c0_32, %c0_33, %c0_34] : memref<8x8x8xf32, #tpu.memory_space<vmem>>, vector<8x8x8xf32>
    tpu.vector_store %arg6[%c0_32, %c0_33, %c0_34], %74 {strides = array<i32>} : memref<8x8x8xf32, #tpu.memory_space<vmem>>, vector<8x8x8xf32>,
    return
  }
}

</mosaic_0001>

<llo_original>
// kernel: tpu_custom_call.1
$region0: #{tpu_custom_call.1}
  #allocation0 [shape = 'u32[]', space=smem, size = 0x4, offset = 0x4, fixed_abs, tag = 'smem constant byte address 0x4 - core index']
  #allocation1 [shape = 'u32[144,128]{1,0:T(1,128)}', space=vmem, size = 0x12000, scoped, tag = 'internal scratch']
  %s0 = inlined_call_operand.vmem [shape: s32[64,1], index: 0, kind: input, shape index: {}]
  %s1 = inlined_call_operand.vmem [shape: f32[16,32], index: 1, kind: input, shape index: {}]
  %s2 = inlined_call_operand.vmem [shape: f32[32,32], index: 2, kind: input, shape index: {}]
  %s3 = inlined_call_operand.vmem [shape: f32[1,32], index: 3, kind: input, shape index: {}]
  %s4 = inlined_call_operand.vmem [shape: f32[32,8], index: 4, kind: input, shape index: {}]
  %s5 = inlined_call_operand.vmem [shape: f32[1,8], index: 5, kind: input, shape index: {}]
  %s6 = inlined_call_operand.hbm [shape: f32[8,8,8], index: 6, kind: output, shape index: {}]
  %s7 = sld [smem:[#allocation0]]
  $region34: #{tpu_custom_call.1} parent=0
    _
  %s9 = ssub.s32 1, %s7
  %s10 = scalar_select 0, %s9, %s7
  $region1: #{tpu_custom_call.1} parent=0
    #allocation2 [shape = 'u8[32768]{0}', space=vmem, size = 0x8000, scoped, tag = 'output window, operand 0, single buffered']
    #allocation3 [shape = 's32[1]{0}', space=sflag, size = 0x4, scoped, tag = 'scoped memory for tpu_custom_call.1']
    %11 = vsyncpa [#allocation3], 0
    // Predicated region
    $region2: #{tpu_custom_call.1} parent=1 // pred_check
      _
    $region3: #{tpu_custom_call.1} parent=1 // pred_check_branch
      %13 = sbr.rel (0) target = $region5
    $region4: #{tpu_custom_call.1} parent=1 // pred_region
      _
    $region5: #{tpu_custom_call.1} parent=1 // pred_fallthru
      _
    // Predicated region
    $region6: #{tpu_custom_call.1} parent=1 // pred_check
      _
    $region7: #{tpu_custom_call.1} parent=1 // pred_check_branch
      %15 = sbr.rel (0) target = $region9
    $region8: #{tpu_custom_call.1} parent=1 // pred_region
      _
    $region9: #{tpu_custom_call.1} parent=1 // pred_fallthru
      _
    // Predicated region
    $region10: #{tpu_custom_call.1} parent=1 // pred_check
      _
    $region11: #{tpu_custom_call.1} parent=1 // pred_check_branch
      %17 = sbr.rel (0) target = $region13
    $region12: #{tpu_custom_call.1} parent=1 // pred_region
      _
    $region13: #{tpu_custom_call.1} parent=1 // pred_fallthru
      _
    // Predicated region
    $region14: #{tpu_custom_call.1} parent=1 // pred_check
      _
    $region15: #{tpu_custom_call.1} parent=1 // pred_check_branch
      %19 = sbr.rel (0) target = $region17
    $region16: #{tpu_custom_call.1} parent=1 // pred_region
      _
    $region17: #{tpu_custom_call.1} parent=1 // pred_fallthru
      _
    // Predicated region
    $region18: #{tpu_custom_call.1} parent=1 // pred_check
      _
    $region19: #{tpu_custom_call.1} parent=1 // pred_check_branch
      %21 = sbr.rel (0) target = $region21
    $region20: #{tpu_custom_call.1} parent=1 // pred_region
      _
    $region21: #{tpu_custom_call.1} parent=1 // pred_fallthru
      _
    // Predicated region
    $region22: #{tpu_custom_call.1} parent=1 // pred_check
      _
    $region23: #{tpu_custom_call.1} parent=1 // pred_check_branch
      %23 = sbr.rel (0) target = $region25
    $region24: #{tpu_custom_call.1} parent=1 // pred_region
      _
    $region25: #{tpu_custom_call.1} parent=1 // pred_fallthru
      _
    %v24 = vld [vmem:[%s0] sm:$0xff]
    %v25 = vld [vmem:[%s0 + $0x8] sm:$0xff]
    %v26 = vld [vmem:[%s0 + $0x10] sm:$0xff]
    %v27 = vld [vmem:[%s0 + $0x18] sm:$0xff]
    %v28 = vld [vmem:[%s0 + $0x20] sm:$0xff]
    %v29 = vld [vmem:[%s0 + $0x28] sm:$0xff]
    %v30 = vld [vmem:[%s0 + $0x30] sm:$0xff]
    %v31 = vld [vmem:[%s0 + $0x38] sm:$0xff]
    %v32 = vlaneseq
    %v33 = vand.u32 %v32, 127
    %34 = vset.pattern.permute.xlu0 0
    %35 = vperm.xlu0 %34, %v24
    %v36 = vpop.permute.xlu0 %35
    %37 = vset.pattern.permute.xlu0 0
    %38 = vperm.xlu0 %37, %v25
    %v39 = vpop.permute.xlu0 %38
    %40 = vset.pattern.permute.xlu0 0
    %41 = vperm.xlu0 %40, %v26
    %v42 = vpop.permute.xlu0 %41
    %43 = vset.pattern.permute.xlu0 0
    %44 = vperm.xlu0 %43, %v27
    %v45 = vpop.permute.xlu0 %44
    %46 = vset.pattern.permute.xlu0 0
    %47 = vperm.xlu0 %46, %v28
    %v48 = vpop.permute.xlu0 %47
    %49 = vset.pattern.permute.xlu0 0
    %50 = vperm.xlu0 %49, %v29
    %v51 = vpop.permute.xlu0 %50
    %52 = vset.pattern.permute.xlu0 0
    %53 = vperm.xlu0 %52, %v30
    %v54 = vpop.permute.xlu0 %53
    %55 = vset.pattern.permute.xlu0 0
    %56 = vperm.xlu0 %55, %v31
    %v57 = vpop.permute.xlu0 %56
    %vm58 = vcmp.eq.s32.totalorder %v36, %v33
    %vm59 = vcmp.eq.s32.totalorder %v39, %v33
    %vm60 = vcmp.eq.s32.totalorder %v42, %v33
    %vm61 = vcmp.eq.s32.totalorder %v45, %v33
    %vm62 = vcmp.eq.s32.totalorder %v48, %v33
    %vm63 = vcmp.eq.s32.totalorder %v51, %v33
    %vm64 = vcmp.eq.s32.totalorder %v54, %v33
    %vm65 = vcmp.eq.s32.totalorder %v57, %v33
    %v66 = vsel %vm58, 1, 0
    %v67 = vsel %vm59, 1, 0
    %v68 = vsel %vm60, 1, 0
    %v69 = vsel %vm61, 1, 0
    %v70 = vsel %vm62, 1, 0
    %v71 = vsel %vm63, 1, 0
    %v72 = vsel %vm64, 1, 0
    %v73 = vsel %vm65, 1, 0
    %v74 = vcvt.s32.f32 %v66
    %v75 = vcvt.s32.f32 %v67
    %v76 = vcvt.s32.f32 %v68
    %v77 = vcvt.s32.f32 %v69
    %v78 = vcvt.s32.f32 %v70
    %v79 = vcvt.s32.f32 %v71
    %v80 = vcvt.s32.f32 %v72
    %v81 = vcvt.s32.f32 %v73
    %v82 = vld [vmem:[%s1] sm:$0xff]
    %v83 = vld [vmem:[%s1 + $0x8] sm:$0xff]
    %v84 = vld [vmem:[%s3] sm:$0x1]
    %v86 = vlaneseq
    %v87 = vshrl.u32 %v86, 7
    %v88 = vsub.s32 0, %v87
    %v89 = vrot.slane %v84, %v88
    %vm91 = vcmask 130048
    %v93 = vsel %vm91, %v74, 0
    %v96 = vsel %vm91, %v75, 0
    %v99 = vsel %vm91, %v76, 0
    %v102 = vsel %vm91, %v77, 0
    %v105 = vsel %vm91, %v78, 0
    %v108 = vsel %vm91, %v79, 0
    %v111 = vsel %vm91, %v80, 0
    %v114 = vsel %vm91, %v81, 0
    %116 = vmatprep.subr.mxu0 0.0
    %117 = vmatpush1.msra.mxu0 %v82
    %118 = vmatprep.subr.mxu0 0.0
    %119 = vmatpush1.msra.mxu0 %v83
    %120 = vmatprep.subr.mxu0 0.0
    %121 = vmatpush1.msra.mxu0 0.0
    %122 = vmatprep.subr.mxu0 0.0
    %123 = vmatpush1.msra.mxu0 0.0
    %124 = vmatprep.subr.mxu0 0.0
    %125 = vmatpush1.msra.mxu0 0.0
    %126 = vmatprep.subr.mxu0 0.0
    %127 = vmatpush1.msra.mxu0 0.0
    %128 = vmatprep.subr.mxu0 0.0
    %129 = vmatpush1.msra.mxu0 0.0
    %130 = vmatprep.subr.mxu0 0.0
    %131 = vmatpush1.msra.mxu0 0.0
    %132 = vmatprep.subr.mxu0 0.0
    %133 = vmatpush1.msra.mxu0 0.0
    %134 = vmatprep.subr.mxu0 0.0
    %135 = vmatpush1.msra.mxu0 0.0
    %136 = vmatprep.subr.mxu0 0.0
    %137 = vmatpush1.msra.mxu0 0.0
    %138 = vmatprep.subr.mxu0 0.0
    %139 = vmatpush1.msra.mxu0 0.0
    %140 = vmatprep.subr.mxu0 0.0
    %141 = vmatpush1.msra.mxu0 0.0
    %142 = vmatprep.subr.mxu0 0.0
    %143 = vmatpush1.msra.mxu0 0.0
    %144 = vmatprep.subr.mxu0 0.0
    %145 = vmatpush1.msra.mxu0 0.0
    %146 = vmatprep.subr.mxu0 0.0
    %147 = vmatpush1.msra.mxu0 0.0
    %148 = vmatprep.subr.mxu0 0.0
    %149 = vmatpush1.msra.mxu0 0.0
    %150 = vmatprep.subr.mxu0 0.0
    %151 = vmatpush1.msra.mxu0 0.0
    %152 = vmatprep.subr.mxu0 0.0
    %153 = vmatpush1.msra.mxu0 0.0
    %154 = vmatprep.subr.mxu0 0.0
    %155 = vmatpush1.msra.mxu0 0.0
    %156 = vmatprep.subr.mxu0 0.0
    %157 = vmatpush1.msra.mxu0 0.0
    %158 = vmatprep.subr.mxu0 0.0
    %159 = vmatpush1.msra.mxu0 0.0
    %160 = vmatprep.subr.mxu0 0.0
    %161 = vmatpush1.msra.mxu0 0.0
    %162 = vmatprep.subr.mxu0 0.0
    %163 = vmatpush1.msra.mxu0 0.0
    %164 = vmatprep.subr.mxu0 0.0
    %165 = vmatpush1.msra.mxu0 0.0
    %166 = vmatprep.subr.mxu0 0.0
    %167 = vmatpush1.msra.mxu0 0.0
    %168 = vmatprep.subr.mxu0 0.0
    %169 = vmatpush1.msra.mxu0 0.0
    %170 = vmatprep.subr.mxu0 0.0
    %171 = vmatpush1.msra.mxu0 0.0
    %172 = vmatprep.subr.mxu0 0.0
    %173 = vmatpush1.msra.mxu0 0.0
    %174 = vmatprep.subr.mxu0 0.0
    %175 = vmatpush1.msra.mxu0 0.0
    %176 = vmatprep.subr.mxu0 0.0
    %177 = vmatpush1.msra.mxu0 0.0
    %178 = vmatprep.subr.mxu0 0.0
    %179 = vmatpush1.msra.mxu0 0.0
    %180 = vmatprep.mubr.f32.mxu0 0.0
    %181 = vmatmul.mubr.f32.gmra.mrb[0].mxu0 %v93
    %v182 = vpop.f32.mrb[0].mxu0
    %v183 = vadd.f32 %v89, %v182
    %v184 = vpop.f32.mrb[0].mxu0
    %185 = vmatprep.mubr.f32.mxu0 0.0
    %186 = vmatmul.mubr.f32.gmra.mrb[0].mxu0 %v96
    %v187 = vpop.f32.mrb[0].mxu0
    %v188 = vadd.f32 %v89, %v187
    %v189 = vpop.f32.mrb[0].mxu0
    %190 = vmatprep.mubr.f32.mxu0 0.0
    %191 = vmatmul.mubr.f32.gmra.mrb[0].mxu0 %v99
    %v192 = vpop.f32.mrb[0].mxu0
    %v193 = vadd.f32 %v89, %v192
    %v194 = vpop.f32.mrb[0].mxu0
    %195 = vmatprep.mubr.f32.mxu0 0.0
    %196 = vmatmul.mubr.f32.gmra.mrb[0].mxu0 %v102
    %v197 = vpop.f32.mrb[0].mxu0
    %v198 = vadd.f32 %v89, %v197
    %v199 = vpop.f32.mrb[0].mxu0
    %200 = vmatprep.mubr.f32.mxu0 0.0
    %201 = vmatmul.mubr.f32.gmra.mrb[0].mxu0 %v105
    %v202 = vpop.f32.mrb[0].mxu0
    %v203 = vadd.f32 %v89, %v202
    %v204 = vpop.f32.mrb[0].mxu0
    %205 = vmatprep.mubr.f32.mxu0 0.0
    %206 = vmatmul.mubr.f32.gmra.mrb[0].mxu0 %v108
    %v207 = vpop.f32.mrb[0].mxu0
    %v208 = vadd.f32 %v89, %v207
    %v209 = vpop.f32.mrb[0].mxu0
    %210 = vmatprep.mubr.f32.mxu0 0.0
    %211 = vmatmul.mubr.f32.gmra.mrb[0].mxu0 %v111
    %v212 = vpop.f32.mrb[0].mxu0
    %v213 = vadd.f32 %v89, %v212
    %v214 = vpop.f32.mrb[0].mxu0
    %215 = vmatprep.mubr.f32.mxu0 0.0
    %216 = vmatmul.mubr.f32.gmra.mrb[0].mxu0 %v114
    %v217 = vpop.f32.mrb[0].mxu0
    %v218 = vadd.f32 %v89, %v217
    %v219 = vpop.f32.mrb[0].mxu0
    %220 = vdwg.mxu0
    %v221 = vld [vmem:[%s2] sm:$0xff]
    %v222 = vld [vmem:[%s2 + $0x8] sm:$0xff]
    %v223 = vld [vmem:[%s2 + $0x10] sm:$0xff]
    %v224 = vld [vmem:[%s2 + $0x18] sm:$0xff]
    %vm225 = vcmask 261120
    %v227 = vsel %vm225, 0.0, 0
    %229 = vmatprep.subr.mxu0 0.0
    %230 = vmatpush1.msra.mxu0 %v221
    %231 = vmatprep.subr.mxu0 0.0
    %232 = vmatpush1.msra.mxu0 %v222
    %233 = vmatprep.subr.mxu0 0.0
    %234 = vmatpush1.msra.mxu0 %v223
    %235 = vmatprep.subr.mxu0 0.0
    %236 = vmatpush1.msra.mxu0 %v224
    %237 = vmatprep.subr.mxu0 0.0
    %238 = vmatpush1.msra.mxu0 0.0
    %239 = vmatprep.subr.mxu0 0.0
    %240 = vmatpush1.msra.mxu0 0.0
    %241 = vmatprep.subr.mxu0 0.0
    %242 = vmatpush1.msra.mxu0 0.0
    %243 = vmatprep.subr.mxu0 0.0
    %244 = vmatpush1.msra.mxu0 0.0
    %245 = vmatprep.subr.mxu0 0.0
    %246 = vmatpush1.msra.mxu0 0.0
    %247 = vmatprep.subr.mxu0 0.0
    %248 = vmatpush1.msra.mxu0 0.0
    %249 = vmatprep.subr.mxu0 0.0
    %250 = vmatpush1.msra.mxu0 0.0
    %251 = vmatprep.subr.mxu0 0.0
    %252 = vmatpush1.msra.mxu0 0.0
    %253 = vmatprep.subr.mxu0 0.0
    %254 = vmatpush1.msra.mxu0 0.0
    %255 = vmatprep.subr.mxu0 0.0
    %256 = vmatpush1.msra.mxu0 0.0
    %257 = vmatprep.subr.mxu0 0.0
    %258 = vmatpush1.msra.mxu0 0.0
    %259 = vmatprep.subr.mxu0 0.0
    %260 = vmatpush1.msra.mxu0 0.0
    %261 = vmatprep.subr.mxu0 0.0
    %262 = vmatpush1.msra.mxu0 0.0
    %263 = vmatprep.subr.mxu0 0.0
    %264 = vmatpush1.msra.mxu0 0.0
    %265 = vmatprep.subr.mxu0 0.0
    %266 = vmatpush1.msra.mxu0 0.0
    %267 = vmatprep.subr.mxu0 0.0
    %268 = vmatpush1.msra.mxu0 0.0
    %269 = vmatprep.subr.mxu0 0.0
    %270 = vmatpush1.msra.mxu0 0.0
    %271 = vmatprep.subr.mxu0 0.0
    %272 = vmatpush1.msra.mxu0 0.0
    %273 = vmatprep.subr.mxu0 0.0
    %274 = vmatpush1.msra.mxu0 0.0
    %275 = vmatprep.subr.mxu0 0.0
    %276 = vmatpush1.msra.mxu0 0.0
    %277 = vmatprep.subr.mxu0 0.0
    %278 = vmatpush1.msra.mxu0 0.0
    %279 = vmatprep.subr.mxu0 0.0
    %280 = vmatpush1.msra.mxu0 0.0
    %281 = vmatprep.subr.mxu0 0.0
    %282 = vmatpush1.msra.mxu0 0.0
    %283 = vmatprep.subr.mxu0 0.0
    %284 = vmatpush1.msra.mxu0 0.0
    %285 = vmatprep.subr.mxu0 0.0
    %286 = vmatpush1.msra.mxu0 0.0
    %287 = vmatprep.subr.mxu0 0.0
    %288 = vmatpush1.msra.mxu0 0.0
    %289 = vmatprep.subr.mxu0 0.0
    %290 = vmatpush1.msra.mxu0 0.0
    %291 = vmatprep.subr.mxu0 0.0
    %292 = vmatpush1.msra.mxu0 0.0
    %293 = vmatprep.mubr.f32.mxu0 0.0
    %294 = vmatmul.mubr.f32.gmra.mrb[0].mxu0 %v227
    %v295 = vpop.f32.mrb[0].mxu0
    %v296 = vadd.f32 %v183, %v295
    %v297 = vpop.f32.mrb[0].mxu0
    %298 = vdwg.mxu0
    %v299 = vmax.f32 %v296, 0.0
    %v301 = vsel %vm225, %v299, 0
    %303 = vmatprep.subr.mxu0 0.0
    %304 = vmatpush1.msra.mxu0 %v221
    %305 = vmatprep.subr.mxu0 0.0
    %306 = vmatpush1.msra.mxu0 %v222
    %307 = vmatprep.subr.mxu0 0.0
    %308 = vmatpush1.msra.mxu0 %v223
    %309 = vmatprep.subr.mxu0 0.0
    %310 = vmatpush1.msra.mxu0 %v224
    %311 = vmatprep.subr.mxu0 0.0
    %312 = vmatpush1.msra.mxu0 0.0
    %313 = vmatprep.subr.mxu0 0.0
    %314 = vmatpush1.msra.mxu0 0.0
    %315 = vmatprep.subr.mxu0 0.0
    %316 = vmatpush1.msra.mxu0 0.0
    %317 = vmatprep.subr.mxu0 0.0
    %318 = vmatpush1.msra.mxu0 0.0
    %319 = vmatprep.subr.mxu0 0.0
    %320 = vmatpush1.msra.mxu0 0.0
    %321 = vmatprep.subr.mxu0 0.0
    %322 = vmatpush1.msra.mxu0 0.0
    %323 = vmatprep.subr.mxu0 0.0
    %324 = vmatpush1.msra.mxu0 0.0
    %325 = vmatprep.subr.mxu0 0.0
    %326 = vmatpush1.msra.mxu0 0.0
    %327 = vmatprep.subr.mxu0 0.0
    %328 = vmatpush1.msra.mxu0 0.0
    %329 = vmatprep.subr.mxu0 0.0
    %330 = vmatpush1.msra.mxu0 0.0
    %331 = vmatprep.subr.mxu0 0.0
    %332 = vmatpush1.msra.mxu0 0.0
    %333 = vmatprep.subr.mxu0 0.0
    %334 = vmatpush1.msra.mxu0 0.0
    %335 = vmatprep.subr.mxu0 0.0
    %336 = vmatpush1.msra.mxu0 0.0
    %337 = vmatprep.subr.mxu0 0.0
    %338 = vmatpush1.msra.mxu0 0.0
    %339 = vmatprep.subr.mxu0 0.0
    %340 = vmatpush1.msra.mxu0 0.0
    %341 = vmatprep.subr.mxu0 0.0
    %342 = vmatpush1.msra.mxu0 0.0
    %343 = vmatprep.subr.mxu0 0.0
    %344 = vmatpush1.msra.mxu0 0.0
    %345 = vmatprep.subr.mxu0 0.0
    %346 = vmatpush1.msra.mxu0 0.0
    %347 = vmatprep.subr.mxu0 0.0
    %348 = vmatpush1.msra.mxu0 0.0
    %349 = vmatprep.subr.mxu0 0.0
    %350 = vmatpush1.msra.mxu0 0.0
    %351 = vmatprep.subr.mxu0 0.0
    %352 = vmatpush1.msra.mxu0 0.0
    %353 = vmatprep.subr.mxu0 0.0
    %354 = vmatpush1.msra.mxu0 0.0
    %355 = vmatprep.subr.mxu0 0.0
    %356 = vmatpush1.msra.mxu0 0.0
    %357 = vmatprep.subr.mxu0 0.0
    %358 = vmatpush1.msra.mxu0 0.0
    %359 = vmatprep.subr.mxu0 0.0
    %360 = vmatpush1.msra.mxu0 0.0
    %361 = vmatprep.subr.mxu0 0.0
    %362 = vmatpush1.msra.mxu0 0.0
    %363 = vmatprep.subr.mxu0 0.0
    %364 = vmatpush1.msra.mxu0 0.0
    %365 = vmatprep.subr.mxu0 0.0
    %366 = vmatpush1.msra.mxu0 0.0
    %367 = vmatprep.mubr.f32.mxu0 0.0
    %368 = vmatmul.mubr.f32.gmra.mrb[0].mxu0 %v301
    %v369 = vpop.f32.mrb[0].mxu0
    %v370 = vadd.f32 %v188, %v369
    %v371 = vpop.f32.mrb[0].mxu0
    %372 = vdwg.mxu0
    %v373 = vmax.f32 %v370, 0.0
    %v375 = vsel %vm225, %v373, 0
    %377 = vmatprep.subr.mxu0 0.0
    %378 = vmatpush1.msra.mxu0 %v221
    %379 = vmatprep.subr.mxu0 0.0
    %380 = vmatpush1.msra.mxu0 %v222
    %381 = vmatprep.subr.mxu0 0.0
    %382 = vmatpush1.msra.mxu0 %v223
    %383 = vmatprep.subr.mxu0 0.0
    %384 = vmatpush1.msra.mxu0 %v224
    %385 = vmatprep.subr.mxu0 0.0
    %386 = vmatpush1.msra.mxu0 0.0
    %387 = vmatprep.subr.mxu0 0.0
    %388 = vmatpush1.msra.mxu0 0.0
    %389 = vmatprep.subr.mxu0 0.0
    %390 = vmatpush1.msra.mxu0 0.0
    %391 = vmatprep.subr.mxu0 0.0
    %392 = vmatpush1.msra.mxu0 0.0
    %393 = vmatprep.subr.mxu0 0.0
    %394 = vmatpush1.msra.mxu0 0.0
    %395 = vmatprep.subr.mxu0 0.0
    %396 = vmatpush1.msra.mxu0 0.0
    %397 = vmatprep.subr.mxu0 0.0
    %398 = vmatpush1.msra.mxu0 0.0
    %399 = vmatprep.subr.mxu0 0.0
    %400 = vmatpush1.msra.mxu0 0.0
    %401 = vmatprep.subr.mxu0 0.0
    %402 = vmatpush1.msra.mxu0 0.0
    %403 = vmatprep.subr.mxu0 0.0
    %404 = vmatpush1.msra.mxu0 0.0
    %405 = vmatprep.subr.mxu0 0.0
    %406 = vmatpush1.msra.mxu0 0.0
    %407 = vmatprep.subr.mxu0 0.0
    %408 = vmatpush1.msra.mxu0 0.0
    %409 = vmatprep.subr.mxu0 0.0
    %410 = vmatpush1.msra.mxu0 0.0
    %411 = vmatprep.subr.mxu0 0.0
    %412 = vmatpush1.msra.mxu0 0.0
    %413 = vmatprep.subr.mxu0 0.0
    %414 = vmatpush1.msra.mxu0 0.0
    %415 = vmatprep.subr.mxu0 0.0
    %416 = vmatpush1.msra.mxu0 0.0
    %417 = vmatprep.subr.mxu0 0.0
    %418 = vmatpush1.msra.mxu0 0.0
    %419 = vmatprep.subr.mxu0 0.0
    %420 = vmatpush1.msra.mxu0 0.0
    %421 = vmatprep.subr.mxu0 0.0
    %422 = vmatpush1.msra.mxu0 0.0
    %423 = vmatprep.subr.mxu0 0.0
    %424 = vmatpush1.msra.mxu0 0.0
    %425 = vmatprep.subr.mxu0 0.0
    %426 = vmatpush1.msra.mxu0 0.0
    %427 = vmatprep.subr.mxu0 0.0
    %428 = vmatpush1.msra.mxu0 0.0
    %429 = vmatprep.subr.mxu0 0.0
    %430 = vmatpush1.msra.mxu0 0.0
    %431 = vmatprep.subr.mxu0 0.0
    %432 = vmatpush1.msra.mxu0 0.0
    %433 = vmatprep.subr.mxu0 0.0
    %434 = vmatpush1.msra.mxu0 0.0
    %435 = vmatprep.subr.mxu0 0.0
    %436 = vmatpush1.msra.mxu0 0.0
    %437 = vmatprep.subr.mxu0 0.0
    %438 = vmatpush1.msra.mxu0 0.0
    %439 = vmatprep.subr.mxu0 0.0
    %440 = vmatpush1.msra.mxu0 0.0
    %441 = vmatprep.mubr.f32.mxu0 0.0
    %442 = vmatmul.mubr.f32.gmra.mrb[0].mxu0 %v375
    %v443 = vpop.f32.mrb[0].mxu0
    %v444 = vadd.f32 %v193, %v443
    %v445 = vpop.f32.mrb[0].mxu0
    %446 = vdwg.mxu0
    %v447 = vmax.f32 %v444, 0.0
    %v449 = vsel %vm225, %v447, 0
    %451 = vmatprep.subr.mxu0 0.0
    %452 = vmatpush1.msra.mxu0 %v221
    %453 = vmatprep.subr.mxu0 0.0
    %454 = vmatpush1.msra.mxu0 %v222
    %455 = vmatprep.subr.mxu0 0.0
    %456 = vmatpush1.msra.mxu0 %v223
    %457 = vmatprep.subr.mxu0 0.0
    %458 = vmatpush1.msra.mxu0 %v224
    %459 = vmatprep.subr.mxu0 0.0
    %460 = vmatpush1.msra.mxu0 0.0
    %461 = vmatprep.subr.mxu0 0.0
    %462 = vmatpush1.msra.mxu0 0.0
    %463 = vmatprep.subr.mxu0 0.0
    %464 = vmatpush1.msra.mxu0 0.0
    %465 = vmatprep.subr.mxu0 0.0
    %466 = vmatpush1.msra.mxu0 0.0
    %467 = vmatprep.subr.mxu0 0.0
    %468 = vmatpush1.msra.mxu0 0.0
    %469 = vmatprep.subr.mxu0 0.0
    %470 = vmatpush1.msra.mxu0 0.0
    %471 = vmatprep.subr.mxu0 0.0
    %472 = vmatpush1.msra.mxu0 0.0
    %473 = vmatprep.subr.mxu0 0.0
    %474 = vmatpush1.msra.mxu0 0.0
    %475 = vmatprep.subr.mxu0 0.0
    %476 = vmatpush1.msra.mxu0 0.0
    %477 = vmatprep.subr.mxu0 0.0
    %478 = vmatpush1.msra.mxu0 0.0
    %479 = vmatprep.subr.mxu0 0.0
    %480 = vmatpush1.msra.mxu0 0.0
    %481 = vmatprep.subr.mxu0 0.0
    %482 = vmatpush1.msra.mxu0 0.0
    %483 = vmatprep.subr.mxu0 0.0
    %484 = vmatpush1.msra.mxu0 0.0
    %485 = vmatprep.subr.mxu0 0.0
    %486 = vmatpush1.msra.mxu0 0.0
    %487 = vmatprep.subr.mxu0 0.0
    %488 = vmatpush1.msra.mxu0 0.0
    %489 = vmatprep.subr.mxu0 0.0
    %490 = vmatpush1.msra.mxu0 0.0
    %491 = vmatprep.subr.mxu0 0.0
    %492 = vmatpush1.msra.mxu0 0.0
    %493 = vmatprep.subr.mxu0 0.0
    %494 = vmatpush1.msra.mxu0 0.0
    %495 = vmatprep.subr.mxu0 0.0
    %496 = vmatpush1.msra.mxu0 0.0
    %497 = vmatprep.subr.mxu0 0.0
    %498 = vmatpush1.msra.mxu0 0.0
    %499 = vmatprep.subr.mxu0 0.0
    %500 = vmatpush1.msra.mxu0 0.0
    %501 = vmatprep.subr.mxu0 0.0
    %502 = vmatpush1.msra.mxu0 0.0
    %503 = vmatprep.subr.mxu0 0.0
    %504 = vmatpush1.msra.mxu0 0.0
    %505 = vmatprep.subr.mxu0 0.0
    %506 = vmatpush1.msra.mxu0 0.0
    %507 = vmatprep.subr.mxu0 0.0
    %508 = vmatpush1.msra.mxu0 0.0
    %509 = vmatprep.subr.mxu0 0.0
    %510 = vmatpush1.msra.mxu0 0.0
    %511 = vmatprep.subr.mxu0 0.0
    %512 = vmatpush1.msra.mxu0 0.0
    %513 = vmatprep.subr.mxu0 0.0
    %514 = vmatpush1.msra.mxu0 0.0
    %515 = vmatprep.mubr.f32.mxu0 0.0
    %516 = vmatmul.mubr.f32.gmra.mrb[0].mxu0 %v449
    %v517 = vpop.f32.mrb[0].mxu0
    %v518 = vadd.f32 %v198, %v517
    %v519 = vpop.f32.mrb[0].mxu0
    %520 = vdwg.mxu0
    %v521 = vmax.f32 %v518, 0.0
    %v523 = vsel %vm225, %v521, 0
    %525 = vmatprep.subr.mxu0 0.0
    %526 = vmatpush1.msra.mxu0 %v221
    %527 = vmatprep.subr.mxu0 0.0
    %528 = vmatpush1.msra.mxu0 %v222
    %529 = vmatprep.subr.mxu0 0.0
    %530 = vmatpush1.msra.mxu0 %v223
    %531 = vmatprep.subr.mxu0 0.0
    %532 = vmatpush1.msra.mxu0 %v224
    %533 = vmatprep.subr.mxu0 0.0
    %534 = vmatpush1.msra.mxu0 0.0
    %535 = vmatprep.subr.mxu0 0.0
    %536 = vmatpush1.msra.mxu0 0.0
    %537 = vmatprep.subr.mxu0 0.0
    %538 = vmatpush1.msra.mxu0 0.0
    %539 = vmatprep.subr.mxu0 0.0
    %540 = vmatpush1.msra.mxu0 0.0
    %541 = vmatprep.subr.mxu0 0.0
    %542 = vmatpush1.msra.mxu0 0.0
    %543 = vmatprep.subr.mxu0 0.0
    %544 = vmatpush1.msra.mxu0 0.0
    %545 = vmatprep.subr.mxu0 0.0
    %546 = vmatpush1.msra.mxu0 0.0
    %547 = vmatprep.subr.mxu0 0.0
    %548 = vmatpush1.msra.mxu0 0.0
    %549 = vmatprep.subr.mxu0 0.0
    %550 = vmatpush1.msra.mxu0 0.0
    %551 = vmatprep.subr.mxu0 0.0
    %552 = vmatpush1.msra.mxu0 0.0
    %553 = vmatprep.subr.mxu0 0.0
    %554 = vmatpush1.msra.mxu0 0.0
    %555 = vmatprep.subr.mxu0 0.0
    %556 = vmatpush1.msra.mxu0 0.0
    %557 = vmatprep.subr.mxu0 0.0
    %558 = vmatpush1.msra.mxu0 0.0
    %559 = vmatprep.subr.mxu0 0.0
    %560 = vmatpush1.msra.mxu0 0.0
    %561 = vmatprep.subr.mxu0 0.0
    %562 = vmatpush1.msra.mxu0 0.0
    %563 = vmatprep.subr.mxu0 0.0
    %564 = vmatpush1.msra.mxu0 0.0
    %565 = vmatprep.subr.mxu0 0.0
    %566 = vmatpush1.msra.mxu0 0.0
    %567 = vmatprep.subr.mxu0 0.0
    %568 = vmatpush1.msra.mxu0 0.0
    %569 = vmatprep.subr.mxu0 0.0
    %570 = vmatpush1.msra.mxu0 0.0
    %571 = vmatprep.subr.mxu0 0.0
    %572 = vmatpush1.msra.mxu0 0.0
    %573 = vmatprep.subr.mxu0 0.0
    %574 = vmatpush1.msra.mxu0 0.0
    %575 = vmatprep.subr.mxu0 0.0
    %576 = vmatpush1.msra.mxu0 0.0
    %577 = vmatprep.subr.mxu0 0.0
    %578 = vmatpush1.msra.mxu0 0.0
    %579 = vmatprep.subr.mxu0 0.0
    %580 = vmatpush1.msra.mxu0 0.0
    %581 = vmatprep.subr.mxu0 0.0
    %582 = vmatpush1.msra.mxu0 0.0
    %583 = vmatprep.subr.mxu0 0.0
    %584 = vmatpush1.msra.mxu0 0.0
    %585 = vmatprep.subr.mxu0 0.0
    %586 = vmatpush1.msra.mxu0 0.0
    %587 = vmatprep.subr.mxu0 0.0
    %588 = vmatpush1.msra.mxu0 0.0
    %589 = vmatprep.mubr.f32.mxu0 0.0
    %590 = vmatmul.mubr.f32.gmra.mrb[0].mxu0 %v523
    %v591 = vpop.f32.mrb[0].mxu0
    %v592 = vadd.f32 %v203, %v591
    %v593 = vpop.f32.mrb[0].mxu0
    %594 = vdwg.mxu0
    %v595 = vmax.f32 %v592, 0.0
    %v597 = vsel %vm225, %v595, 0
    %599 = vmatprep.subr.mxu0 0.0
    %600 = vmatpush1.msra.mxu0 %v221
    %601 = vmatprep.subr.mxu0 0.0
    %602 = vmatpush1.msra.mxu0 %v222
    %603 = vmatprep.subr.mxu0 0.0
    %604 = vmatpush1.msra.mxu0 %v223
    %605 = vmatprep.subr.mxu0 0.0
    %606 = vmatpush1.msra.mxu0 %v224
    %607 = vmatprep.subr.mxu0 0.0
    %608 = vmatpush1.msra.mxu0 0.0
    %609 = vmatprep.subr.mxu0 0.0
    %610 = vmatpush1.msra.mxu0 0.0
    %611 = vmatprep.subr.mxu0 0.0
    %612 = vmatpush1.msra.mxu0 0.0
    %613 = vmatprep.subr.mxu0 0.0
    %614 = vmatpush1.msra.mxu0 0.0
    %615 = vmatprep.subr.mxu0 0.0
    %616 = vmatpush1.msra.mxu0 0.0
    %617 = vmatprep.subr.mxu0 0.0
    %618 = vmatpush1.msra.mxu0 0.0
    %619 = vmatprep.subr.mxu0 0.0
    %620 = vmatpush1.msra.mxu0 0.0
    %621 = vmatprep.subr.mxu0 0.0
    %622 = vmatpush1.msra.mxu0 0.0
    %623 = vmatprep.subr.mxu0 0.0
    %624 = vmatpush1.msra.mxu0 0.0
    %625 = vmatprep.subr.mxu0 0.0
    %626 = vmatpush1.msra.mxu0 0.0
    %627 = vmatprep.subr.mxu0 0.0
    %628 = vmatpush1.msra.mxu0 0.0
    %629 = vmatprep.subr.mxu0 0.0
    %630 = vmatpush1.msra.mxu0 0.0
    %631 = vmatprep.subr.mxu0 0.0
    %632 = vmatpush1.msra.mxu0 0.0
    %633 = vmatprep.subr.mxu0 0.0
    %634 = vmatpush1.msra.mxu0 0.0
    %635 = vmatprep.subr.mxu0 0.0
    %636 = vmatpush1.msra.mxu0 0.0
    %637 = vmatprep.subr.mxu0 0.0
    %638 = vmatpush1.msra.mxu0 0.0
    %639 = vmatprep.subr.mxu0 0.0
    %640 = vmatpush1.msra.mxu0 0.0
    %641 = vmatprep.subr.mxu0 0.0
    %642 = vmatpush1.msra.mxu0 0.0
    %643 = vmatprep.subr.mxu0 0.0
    %644 = vmatpush1.msra.mxu0 0.0
    %645 = vmatprep.subr.mxu0 0.0
    %646 = vmatpush1.msra.mxu0 0.0
    %647 = vmatprep.subr.mxu0 0.0
    %648 = vmatpush1.msra.mxu0 0.0
    %649 = vmatprep.subr.mxu0 0.0
    %650 = vmatpush1.msra.mxu0 0.0
    %651 = vmatprep.subr.mxu0 0.0
    %652 = vmatpush1.msra.mxu0 0.0
    %653 = vmatprep.subr.mxu0 0.0
    %654 = vmatpush1.msra.mxu0 0.0
    %655 = vmatprep.subr.mxu0 0.0
    %656 = vmatpush1.msra.mxu0 0.0
    %657 = vmatprep.subr.mxu0 0.0
    %658 = vmatpush1.msra.mxu0 0.0
    %659 = vmatprep.subr.mxu0 0.0
    %660 = vmatpush1.msra.mxu0 0.0
    %661 = vmatprep.subr.mxu0 0.0
    %662 = vmatpush1.msra.mxu0 0.0
    %663 = vmatprep.mubr.f32.mxu0 0.0
    %664 = vmatmul.mubr.f32.gmra.mrb[0].mxu0 %v597
    %v665 = vpop.f32.mrb[0].mxu0
    %v666 = vadd.f32 %v208, %v665
    %v667 = vpop.f32.mrb[0].mxu0
    %668 = vdwg.mxu0
    %v669 = vmax.f32 %v666, 0.0
    %v671 = vsel %vm225, %v669, 0
    %673 = vmatprep.subr.mxu0 0.0
    %674 = vmatpush1.msra.mxu0 %v221
    %675 = vmatprep.subr.mxu0 0.0
    %676 = vmatpush1.msra.mxu0 %v222
    %677 = vmatprep.subr.mxu0 0.0
    %678 = vmatpush1.msra.mxu0 %v223
    %679 = vmatprep.subr.mxu0 0.0
    %680 = vmatpush1.msra.mxu0 %v224
    %681 = vmatprep.subr.mxu0 0.0
    %682 = vmatpush1.msra.mxu0 0.0
    %683 = vmatprep.subr.mxu0 0.0
    %684 = vmatpush1.msra.mxu0 0.0
    %685 = vmatprep.subr.mxu0 0.0
    %686 = vmatpush1.msra.mxu0 0.0
    %687 = vmatprep.subr.mxu0 0.0
    %688 = vmatpush1.msra.mxu0 0.0
    %689 = vmatprep.subr.mxu0 0.0
    %690 = vmatpush1.msra.mxu0 0.0
    %691 = vmatprep.subr.mxu0 0.0
    %692 = vmatpush1.msra.mxu0 0.0
    %693 = vmatprep.subr.mxu0 0.0
    %694 = vmatpush1.msra.mxu0 0.0
    %695 = vmatprep.subr.mxu0 0.0
    %696 = vmatpush1.msra.mxu0 0.0
    %697 = vmatprep.subr.mxu0 0.0
    %698 = vmatpush1.msra.mxu0 0.0
    %699 = vmatprep.subr.mxu0 0.0
    %700 = vmatpush1.msra.mxu0 0.0
    %701 = vmatprep.subr.mxu0 0.0
    %702 = vmatpush1.msra.mxu0 0.0
    %703 = vmatprep.subr.mxu0 0.0
    %704 = vmatpush1.msra.mxu0 0.0
    %705 = vmatprep.subr.mxu0 0.0
    %706 = vmatpush1.msra.mxu0 0.0
    %707 = vmatprep.subr.mxu0 0.0
    %708 = vmatpush1.msra.mxu0 0.0
    %709 = vmatprep.subr.mxu0 0.0
    %710 = vmatpush1.msra.mxu0 0.0
    %711 = vmatprep.subr.mxu0 0.0
    %712 = vmatpush1.msra.mxu0 0.0
    %713 = vmatprep.subr.mxu0 0.0
    %714 = vmatpush1.msra.mxu0 0.0
    %715 = vmatprep.subr.mxu0 0.0
    %716 = vmatpush1.msra.mxu0 0.0
    %717 = vmatprep.subr.mxu0 0.0
    %718 = vmatpush1.msra.mxu0 0.0
    %719 = vmatprep.subr.mxu0 0.0
    %720 = vmatpush1.msra.mxu0 0.0
    %721 = vmatprep.subr.mxu0 0.0
    %722 = vmatpush1.msra.mxu0 0.0
    %723 = vmatprep.subr.mxu0 0.0
    %724 = vmatpush1.msra.mxu0 0.0
    %725 = vmatprep.subr.mxu0 0.0
    %726 = vmatpush1.msra.mxu0 0.0
    %727 = vmatprep.subr.mxu0 0.0
    %728 = vmatpush1.msra.mxu0 0.0
    %729 = vmatprep.subr.mxu0 0.0
    %730 = vmatpush1.msra.mxu0 0.0
    %731 = vmatprep.subr.mxu0 0.0
    %732 = vmatpush1.msra.mxu0 0.0
    %733 = vmatprep.subr.mxu0 0.0
    %734 = vmatpush1.msra.mxu0 0.0
    %735 = vmatprep.subr.mxu0 0.0
    %736 = vmatpush1.msra.mxu0 0.0
    %737 = vmatprep.mubr.f32.mxu0 0.0
    %738 = vmatmul.mubr.f32.gmra.mrb[0].mxu0 %v671
    %v739 = vpop.f32.mrb[0].mxu0
    %v740 = vadd.f32 %v213, %v739
    %v741 = vpop.f32.mrb[0].mxu0
    %742 = vdwg.mxu0
    %v743 = vmax.f32 %v740, 0.0
    %v745 = vsel %vm225, %v743, 0
    %747 = vmatprep.subr.mxu0 0.0
    %748 = vmatpush1.msra.mxu0 %v221
    %749 = vmatprep.subr.mxu0 0.0
    %750 = vmatpush1.msra.mxu0 %v222
    %751 = vmatprep.subr.mxu0 0.0
    %752 = vmatpush1.msra.mxu0 %v223
    %753 = vmatprep.subr.mxu0 0.0
    %754 = vmatpush1.msra.mxu0 %v224
    %755 = vmatprep.subr.mxu0 0.0
    %756 = vmatpush1.msra.mxu0 0.0
    %757 = vmatprep.subr.mxu0 0.0
    %758 = vmatpush1.msra.mxu0 0.0
    %759 = vmatprep.subr.mxu0 0.0
    %760 = vmatpush1.msra.mxu0 0.0
    %761 = vmatprep.subr.mxu0 0.0
    %762 = vmatpush1.msra.mxu0 0.0
    %763 = vmatprep.subr.mxu0 0.0
    %764 = vmatpush1.msra.mxu0 0.0
    %765 = vmatprep.subr.mxu0 0.0
    %766 = vmatpush1.msra.mxu0 0.0
    %767 = vmatprep.subr.mxu0 0.0
    %768 = vmatpush1.msra.mxu0 0.0
    %769 = vmatprep.subr.mxu0 0.0
    %770 = vmatpush1.msra.mxu0 0.0
    %771 = vmatprep.subr.mxu0 0.0
    %772 = vmatpush1.msra.mxu0 0.0
    %773 = vmatprep.subr.mxu0 0.0
    %774 = vmatpush1.msra.mxu0 0.0
    %775 = vmatprep.subr.mxu0 0.0
    %776 = vmatpush1.msra.mxu0 0.0
    %777 = vmatprep.subr.mxu0 0.0
    %778 = vmatpush1.msra.mxu0 0.0
    %779 = vmatprep.subr.mxu0 0.0
    %780 = vmatpush1.msra.mxu0 0.0
    %781 = vmatprep.subr.mxu0 0.0
    %782 = vmatpush1.msra.mxu0 0.0
    %783 = vmatprep.subr.mxu0 0.0
    %784 = vmatpush1.msra.mxu0 0.0
    %785 = vmatprep.subr.mxu0 0.0
    %786 = vmatpush1.msra.mxu0 0.0
    %787 = vmatprep.subr.mxu0 0.0
    %788 = vmatpush1.msra.mxu0 0.0
    %789 = vmatprep.subr.mxu0 0.0
    %790 = vmatpush1.msra.mxu0 0.0
    %791 = vmatprep.subr.mxu0 0.0
    %792 = vmatpush1.msra.mxu0 0.0
    %793 = vmatprep.subr.mxu0 0.0
    %794 = vmatpush1.msra.mxu0 0.0
    %795 = vmatprep.subr.mxu0 0.0
    %796 = vmatpush1.msra.mxu0 0.0
    %797 = vmatprep.subr.mxu0 0.0
    %798 = vmatpush1.msra.mxu0 0.0
    %799 = vmatprep.subr.mxu0 0.0
    %800 = vmatpush1.msra.mxu0 0.0
    %801 = vmatprep.subr.mxu0 0.0
    %802 = vmatpush1.msra.mxu0 0.0
    %803 = vmatprep.subr.mxu0 0.0
    %804 = vmatpush1.msra.mxu0 0.0
    %805 = vmatprep.subr.mxu0 0.0
    %806 = vmatpush1.msra.mxu0 0.0
    %807 = vmatprep.subr.mxu0 0.0
    %808 = vmatpush1.msra.mxu0 0.0
    %809 = vmatprep.subr.mxu0 0.0
    %810 = vmatpush1.msra.mxu0 0.0
    %811 = vmatprep.mubr.f32.mxu0 0.0
    %812 = vmatmul.mubr.f32.gmra.mrb[0].mxu0 %v745
    %v813 = vpop.f32.mrb[0].mxu0
    %v814 = vadd.f32 %v218, %v813
    %v815 = vpop.f32.mrb[0].mxu0
    %816 = vdwg.mxu0
    %v817 = vmax.f32 %v814, 0.0
    %v818 = vld [vmem:[%s4] sm:$0xff]
    %v819 = vld [vmem:[%s4 + $0x8] sm:$0xff]
    %v820 = vld [vmem:[%s4 + $0x10] sm:$0xff]
    %v821 = vld [vmem:[%s4 + $0x18] sm:$0xff]
    %v822 = vld [vmem:[%s5] sm:$0x1]
    %v824 = vlaneseq
    %v825 = vshrl.u32 %v824, 7
    %v826 = vsub.s32 0, %v825
    %v827 = vrot.slane %v822, %v826
    %v830 = vsel %vm225, %v817, 0
    %832 = vmatprep.subr.mxu0 0.0
    %833 = vmatpush1.msra.mxu0 %v818
    %834 = vmatprep.subr.mxu0 0.0
    %835 = vmatpush1.msra.mxu0 %v819
    %836 = vmatprep.subr.mxu0 0.0
    %837 = vmatpush1.msra.mxu0 %v820
    %838 = vmatprep.subr.mxu0 0.0
    %839 = vmatpush1.msra.mxu0 %v821
    %840 = vmatprep.subr.mxu0 0.0
    %841 = vmatpush1.msra.mxu0 0.0
    %842 = vmatprep.subr.mxu0 0.0
    %843 = vmatpush1.msra.mxu0 0.0
    %844 = vmatprep.subr.mxu0 0.0
    %845 = vmatpush1.msra.mxu0 0.0
    %846 = vmatprep.subr.mxu0 0.0
    %847 = vmatpush1.msra.mxu0 0.0
    %848 = vmatprep.subr.mxu0 0.0
    %849 = vmatpush1.msra.mxu0 0.0
    %850 = vmatprep.subr.mxu0 0.0
    %851 = vmatpush1.msra.mxu0 0.0
    %852 = vmatprep.subr.mxu0 0.0
    %853 = vmatpush1.msra.mxu0 0.0
    %854 = vmatprep.subr.mxu0 0.0
    %855 = vmatpush1.msra.mxu0 0.0
    %856 = vmatprep.subr.mxu0 0.0
    %857 = vmatpush1.msra.mxu0 0.0
    %858 = vmatprep.subr.mxu0 0.0
    %859 = vmatpush1.msra.mxu0 0.0
    %860 = vmatprep.subr.mxu0 0.0
    %861 = vmatpush1.msra.mxu0 0.0
    %862 = vmatprep.subr.mxu0 0.0
    %863 = vmatpush1.msra.mxu0 0.0
    %864 = vmatprep.subr.mxu0 0.0
    %865 = vmatpush1.msra.mxu0 0.0
    %866 = vmatprep.subr.mxu0 0.0
    %867 = vmatpush1.msra.mxu0 0.0
    %868 = vmatprep.subr.mxu0 0.0
    %869 = vmatpush1.msra.mxu0 0.0
    %870 = vmatprep.subr.mxu0 0.0
    %871 = vmatpush1.msra.mxu0 0.0
    %872 = vmatprep.subr.mxu0 0.0
    %873 = vmatpush1.msra.mxu0 0.0
    %874 = vmatprep.subr.mxu0 0.0
    %875 = vmatpush1.msra.mxu0 0.0
    %876 = vmatprep.subr.mxu0 0.0
    %877 = vmatpush1.msra.mxu0 0.0
    %878 = vmatprep.subr.mxu0 0.0
    %879 = vmatpush1.msra.mxu0 0.0
    %880 = vmatprep.subr.mxu0 0.0
    %881 = vmatpush1.msra.mxu0 0.0
    %882 = vmatprep.subr.mxu0 0.0
    %883 = vmatpush1.msra.mxu0 0.0
    %884 = vmatprep.subr.mxu0 0.0
    %885 = vmatpush1.msra.mxu0 0.0
    %886 = vmatprep.subr.mxu0 0.0
    %887 = vmatpush1.msra.mxu0 0.0
    %888 = vmatprep.subr.mxu0 0.0
    %889 = vmatpush1.msra.mxu0 0.0
    %890 = vmatprep.subr.mxu0 0.0
    %891 = vmatpush1.msra.mxu0 0.0
    %892 = vmatprep.subr.mxu0 0.0
    %893 = vmatpush1.msra.mxu0 0.0
    %894 = vmatprep.subr.mxu0 0.0
    %895 = vmatpush1.msra.mxu0 0.0
    %896 = vmatprep.mubr.f32.mxu0 0.0
    %897 = vmatmul.mubr.f32.gmra.mrb[0].mxu0 %v301
    %v898 = vpop.f32.mrb[0].mxu0
    %v899 = vadd.f32 %v827, %v898
    %v900 = vpop.f32.mrb[0].mxu0
    %901 = vmatprep.mubr.f32.mxu0 0.0
    %902 = vmatmul.mubr.f32.gmra.mrb[0].mxu0 %v375
    %v903 = vpop.f32.mrb[0].mxu0
    %v904 = vadd.f32 %v827, %v903
    %v905 = vpop.f32.mrb[0].mxu0
    %906 = vmatprep.mubr.f32.mxu0 0.0
    %907 = vmatmul.mubr.f32.gmra.mrb[0].mxu0 %v449
    %v908 = vpop.f32.mrb[0].mxu0
    %v909 = vadd.f32 %v827, %v908
    %v910 = vpop.f32.mrb[0].mxu0
    %911 = vmatprep.mubr.f32.mxu0 0.0
    %912 = vmatmul.mubr.f32.gmra.mrb[0].mxu0 %v523
    %v913 = vpop.f32.mrb[0].mxu0
    %v914 = vadd.f32 %v827, %v913
    %v915 = vpop.f32.mrb[0].mxu0
    %916 = vmatprep.mubr.f32.mxu0 0.0
    %917 = vmatmul.mubr.f32.gmra.mrb[0].mxu0 %v597
    %v918 = vpop.f32.mrb[0].mxu0
    %v919 = vadd.f32 %v827, %v918
    %v920 = vpop.f32.mrb[0].mxu0
    %921 = vmatprep.mubr.f32.mxu0 0.0
    %922 = vmatmul.mubr.f32.gmra.mrb[0].mxu0 %v671
    %v923 = vpop.f32.mrb[0].mxu0
    %v924 = vadd.f32 %v827, %v923
    %v925 = vpop.f32.mrb[0].mxu0
    %926 = vmatprep.mubr.f32.mxu0 0.0
    %927 = vmatmul.mubr.f32.gmra.mrb[0].mxu0 %v745
    %v928 = vpop.f32.mrb[0].mxu0
    %v929 = vadd.f32 %v827, %v928
    %v930 = vpop.f32.mrb[0].mxu0
    %931 = vmatprep.mubr.f32.mxu0 0.0
    %932 = vmatmul.mubr.f32.gmra.mrb[0].mxu0 %v830
    %v933 = vpop.f32.mrb[0].mxu0
    %v934 = vadd.f32 %v827, %v933
    %v935 = vpop.f32.mrb[0].mxu0
    %936 = vdwg.mxu0
    %v937 = vlaneseq
    %v938 = vshrl.u32 %v937, 7
    %vm939 = vcmp.lt.s32.totalorder %v938, 2
    %v940 = vsel %vm939, %v899, -1e+30
    %v941 = vsel %vm939, %v904, -1e+30
    %v942 = vsel %vm939, %v909, -1e+30
    %v943 = vsel %vm939, %v914, -1e+30
    %v944 = vsel %vm939, %v919, -1e+30
    %v945 = vsel %vm939, %v924, -1e+30
    %v946 = vsel %vm939, %v929, -1e+30
    %v947 = vsel %vm939, %v934, -1e+30
    %vm948 = vcmask 64512
    %v949 = vsel %vm948, %v940, -inf
    %v950 = vrot.slane %v949, 4
    %v951 = vmax.f32 %v949, %v950
    %v952 = vrot.slane %v951, 2
    %v953 = vmax.f32 %v951, %v952
    %v954 = vrot.slane %v953, 1
    %v955 = vmax.f32 %v953, %v954
    %v956 = vsel %vm948, %v941, -inf
    %v957 = vrot.slane %v956, 4
    %v958 = vmax.f32 %v956, %v957
    %v959 = vrot.slane %v958, 2
    %v960 = vmax.f32 %v958, %v959
    %v961 = vrot.slane %v960, 1
    %v962 = vmax.f32 %v960, %v961
    %v963 = vsel %vm948, %v942, -inf
    %v964 = vrot.slane %v963, 4
    %v965 = vmax.f32 %v963, %v964
    %v966 = vrot.slane %v965, 2
    %v967 = vmax.f32 %v965, %v966
    %v968 = vrot.slane %v967, 1
    %v969 = vmax.f32 %v967, %v968
    %v970 = vsel %vm948, %v943, -inf
    %v971 = vrot.slane %v970, 4
    %v972 = vmax.f32 %v970, %v971
    %v973 = vrot.slane %v972, 2
    %v974 = vmax.f32 %v972, %v973
    %v975 = vrot.slane %v974, 1
    %v976 = vmax.f32 %v974, %v975
    %v977 = vsel %vm948, %v944, -inf
    %v978 = vrot.slane %v977, 4
    %v979 = vmax.f32 %v977, %v978
    %v980 = vrot.slane %v979, 2
    %v981 = vmax.f32 %v979, %v980
    %v982 = vrot.slane %v981, 1
    %v983 = vmax.f32 %v981, %v982
    %v984 = vsel %vm948, %v945, -inf
    %v985 = vrot.slane %v984, 4
    %v986 = vmax.f32 %v984, %v985
    %v987 = vrot.slane %v986, 2
    %v988 = vmax.f32 %v986, %v987
    %v989 = vrot.slane %v988, 1
    %v990 = vmax.f32 %v988, %v989
    %v991 = vsel %vm948, %v946, -inf
    %v992 = vrot.slane %v991, 4
    %v993 = vmax.f32 %v991, %v992
    %v994 = vrot.slane %v993, 2
    %v995 = vmax.f32 %v993, %v994
    %v996 = vrot.slane %v995, 1
    %v997 = vmax.f32 %v995, %v996
    %v998 = vsel %vm948, %v947, -inf
    %v999 = vrot.slane %v998, 4
    %v1000 = vmax.f32 %v998, %v999
    %v1001 = vrot.slane %v1000, 2
    %v1002 = vmax.f32 %v1000, %v1001
    %v1003 = vrot.slane %v1002, 1
    %v1004 = vmax.f32 %v1002, %v1003
    %v1005 = vsub.f32 %v940, %v955
    %v1006 = vsub.f32 %v941, %v962
    %v1007 = vsub.f32 %v942, %v969
    %v1008 = vsub.f32 %v943, %v976
    %v1009 = vsub.f32 %v944, %v983
    %v1010 = vsub.f32 %v945, %v990
    %v1011 = vsub.f32 %v946, %v997
    %v1012 = vsub.f32 %v947, %v1004
    %v1013 = vmul.f32 %v1005, 1.442695
    %v1014 = vpow.pop %v1013
    %v1015 = vmul.f32 %v1006, 1.442695
    %v1016 = vpow.pop %v1015
    %v1017 = vmul.f32 %v1007, 1.442695
    %v1018 = vpow.pop %v1017
    %v1019 = vmul.f32 %v1008, 1.442695
    %v1020 = vpow.pop %v1019
    %v1021 = vmul.f32 %v1009, 1.442695
    %v1022 = vpow.pop %v1021
    %v1023 = vmul.f32 %v1010, 1.442695
    %v1024 = vpow.pop %v1023
    %v1025 = vmul.f32 %v1011, 1.442695
    %v1026 = vpow.pop %v1025
    %v1027 = vmul.f32 %v1012, 1.442695
    %v1028 = vpow.pop %v1027
    %v1029 = vsel %vm948, %v1014, 0.0
    %v1030 = vrot.slane %v1029, 4
    %v1031 = vadd.f32 %v1029, %v1030
    %v1032 = vrot.slane %v1031, 2
    %v1033 = vadd.f32 %v1031, %v1032
    %v1034 = vrot.slane %v1033, 1
    %v1035 = vadd.f32 %v1033, %v1034
    %v1036 = vsel %vm948, %v1016, 0.0
    %v1037 = vrot.slane %v1036, 4
    %v1038 = vadd.f32 %v1036, %v1037
    %v1039 = vrot.slane %v1038, 2
    %v1040 = vadd.f32 %v1038, %v1039
    %v1041 = vrot.slane %v1040, 1
    %v1042 = vadd.f32 %v1040, %v1041
    %v1043 = vsel %vm948, %v1018, 0.0
    %v1044 = vrot.slane %v1043, 4
    %v1045 = vadd.f32 %v1043, %v1044
    %v1046 = vrot.slane %v1045, 2
    %v1047 = vadd.f32 %v1045, %v1046
    %v1048 = vrot.slane %v1047, 1
    %v1049 = vadd.f32 %v1047, %v1048
    %v1050 = vsel %vm948, %v1020, 0.0
    %v1051 = vrot.slane %v1050, 4
    %v1052 = vadd.f32 %v1050, %v1051
    %v1053 = vrot.slane %v1052, 2
    %v1054 = vadd.f32 %v1052, %v1053
    %v1055 = vrot.slane %v1054, 1
    %v1056 = vadd.f32 %v1054, %v1055
    %v1057 = vsel %vm948, %v1022, 0.0
    %v1058 = vrot.slane %v1057, 4
    %v1059 = vadd.f32 %v1057, %v1058
    %v1060 = vrot.slane %v1059, 2
    %v1061 = vadd.f32 %v1059, %v1060
    %v1062 = vrot.slane %v1061, 1
    %v1063 = vadd.f32 %v1061, %v1062
    %v1064 = vsel %vm948, %v1024, 0.0
    %v1065 = vrot.slane %v1064, 4
    %v1066 = vadd.f32 %v1064, %v1065
    %v1067 = vrot.slane %v1066, 2
    %v1068 = vadd.f32 %v1066, %v1067
    %v1069 = vrot.slane %v1068, 1
    %v1070 = vadd.f32 %v1068, %v1069
    %v1071 = vsel %vm948, %v1026, 0.0
    %v1072 = vrot.slane %v1071, 4
    %v1073 = vadd.f32 %v1071, %v1072
    %v1074 = vrot.slane %v1073, 2
    %v1075 = vadd.f32 %v1073, %v1074
    %v1076 = vrot.slane %v1075, 1
    %v1077 = vadd.f32 %v1075, %v1076
    %v1078 = vsel %vm948, %v1028, 0.0
    %v1079 = vrot.slane %v1078, 4
    %v1080 = vadd.f32 %v1078, %v1079
    %v1081 = vrot.slane %v1080, 2
    %v1082 = vadd.f32 %v1080, %v1081
    %v1083 = vrot.slane %v1082, 1
    %v1084 = vadd.f32 %v1082, %v1083
    %v1085 = vrcp.pop %v1035
    %v1086 = vrcp.pop %v1042
    %v1087 = vrcp.pop %v1049
    %v1088 = vrcp.pop %v1056
    %v1089 = vrcp.pop %v1063
    %v1090 = vrcp.pop %v1070
    %v1091 = vrcp.pop %v1077
    %v1092 = vrcp.pop %v1084
    %v1093 = vmul.f32 %v1014, %v1085
    %v1094 = vmul.f32 %v1016, %v1086
    %v1095 = vmul.f32 %v1018, %v1087
    %v1096 = vmul.f32 %v1020, %v1088
    %v1097 = vmul.f32 %v1022, %v1089
    %v1098 = vmul.f32 %v1024, %v1090
    %v1099 = vmul.f32 %v1026, %v1091
    %v1100 = vmul.f32 %v1028, %v1092
    %1101 = vst.msk [vmem:[#allocation2] sm:$0xff] %vm948, %v1093
    %1102 = vst.msk [vmem:[#allocation2 + $0x8] sm:$0xff] %vm948, %v1094
    %1103 = vst.msk [vmem:[#allocation2 + $0x10] sm:$0xff] %vm948, %v1095
    %1104 = vst.msk [vmem:[#allocation2 + $0x18] sm:$0xff] %vm948, %v1096
    %1105 = vst.msk [vmem:[#allocation2 + $0x20] sm:$0xff] %vm948, %v1097
    %1106 = vst.msk [vmem:[#allocation2 + $0x28] sm:$0xff] %vm948, %v1098
    %1107 = vst.msk [vmem:[#allocation2 + $0x30] sm:$0xff] %vm948, %v1099
    %1108 = vst.msk [vmem:[#allocation2 + $0x38] sm:$0xff] %vm948, %v1100
    // Predicated region
    $region26: #{tpu_custom_call.1} parent=1 // pred_check
      _
    $region27: #{tpu_custom_call.1} parent=1 // pred_check_branch
      %1110 = sbr.rel (0) target = $region29
    $region28: #{tpu_custom_call.1} parent=1 // pred_region
      %s1112 = ssub.s32 1024, 1024
      %1113 = vsyncadd [#allocation3], %s1112
      %s1114 = sshll.u32 [#allocation2], 4
      %s1115 = int_to_ptr.vmem [resolvable:$true] %s1114
      %1120 = dma.vmem_to_hbm [thread:$0]  %s1115, 1024, %s6, [#allocation3], 128, 128, 8
    $region29: #{tpu_custom_call.1} parent=1 // pred_fallthru
      _
    // Predicated region
    $region30: #{tpu_custom_call.1} parent=1 // pred_check
      _
    $region31: #{tpu_custom_call.1} parent=1 // pred_check_branch
      %1122 = sbr.rel (0) target = $region33
    $region32: #{tpu_custom_call.1} parent=1 // pred_region
      %1123 = dma.done [#allocation3], 1024
    $region33: #{tpu_custom_call.1} parent=1 // pred_fallthru
      _
    %1124 = vsyncpa [#allocation3], 1

</llo_original>
